<compile_context>
chip_gen: v5e
topology: v5e:2x2
jax: 0.10.0
libtpu: 0.0.40
codegen_flags: <defaults>
</compile_context>

<pallas_src>
import math
import functools

import jax
import jax.numpy as jnp
from jax.experimental import pallas as pl
from jax.experimental.pallas import tpu as pltpu


def _kan_basis_kernel(x_ref, w_ref, b_ref, o_ref, *, num_basis):
    # x_ref: (tb, I); w_ref/b_ref: (1, J*I) with sqrt(beta) pre-folded;
    # o_ref: (tb, J*I) lane-dense output block.
    x = x_ref[...].astype(jnp.float32)                  # (tb, I)
    xt = jnp.tile(x, (1, num_basis))                    # (tb, J*I); lane replication (XLU)
    z = xt * w_ref[...].astype(jnp.float32) + b_ref[...].astype(jnp.float32)
    o_ref[...] = jnp.exp(-(z * z)).astype(o_ref.dtype)  # EUP transcendental


def _choose_batch_tile(B, flat_out, itemsize, *, target_out_tile_bytes=4 << 20,
                       max_tb=2048):
    """Pick a batch tile: ~4 MiB output tile, multiple of 8, capped at max_tb/B."""
    tb = target_out_tile_bytes // max(flat_out * itemsize, 1)
    tb = max(8, min(tb, max_tb, B))
    return (tb // 8) * 8


def kan_basis_forward(x, weights, bias, beta, *, block_b=None):
    """x: (..., in_features) -> (..., num_basis, in_features)."""
    num_basis, in_features = weights.shape
    assert x.shape[-1] == in_features
    flat = num_basis * in_features

    batch_shape = x.shape[:-1]
    B = int(math.prod(batch_shape)) if batch_shape else 1
    x2d = x.reshape(B, in_features)

    # Fold beta into the parameters: exp(-beta*z^2) == exp(-(sqrt(beta)*z)^2).
    sb = math.sqrt(float(beta))
    w_flat = (weights * sb).reshape(1, flat)
    b_flat = (bias * sb).reshape(1, flat)

    itemsize = jnp.dtype(x.dtype).itemsize
    if B <= 8:
        tb = B
    else:
        tb = block_b if block_b is not None else _choose_batch_tile(B, flat, itemsize)
        tb = max(8, min(int(tb), B))
        tb = (tb // 8) * 8          # keep (8,128) sublane rule satisfied
    grid_b = pl.cdiv(B, tb)         # ragged last block handled by Pallas (writes masked)

    kernel = functools.partial(_kan_basis_kernel, num_basis=num_basis)

    cost = pl.CostEstimate(
        flops=3 * B * flat,
        transcendentals=B * flat,
        bytes_accessed=itemsize * (B * in_features + 2 * flat + B * flat),
    )

    out = pl.pallas_call(
        kernel,
        out_shape=jax.ShapeDtypeStruct((B, flat), x.dtype),
        grid_spec=pltpu.PrefetchScalarGridSpec(
            num_scalar_prefetch=0,
            grid=(grid_b,),
            in_specs=[
                pl.BlockSpec((tb, in_features), lambda i: (i, 0)),
                pl.BlockSpec((1, flat), lambda i: (0, 0)),
                pl.BlockSpec((1, flat), lambda i: (0, 0)),
            ],
            out_specs=pl.BlockSpec((tb, flat), lambda i: (i, 0)),
        ),
        compiler_params=pltpu.CompilerParams(
            dimension_semantics=("parallel",),
            vmem_limit_bytes=32 * 1024 * 1024,
        ),
        cost_estimate=cost,
    )(x2d, w_flat, b_flat)

    # (B, J*I) is contiguous -> free metadata reshape back to (..., J, I).
    return out.reshape(*batch_shape, num_basis, in_features)


def init_kan_basis_params(key, in_features, num_basis, dtype=jnp.float32):
    """Deterministic parameter init mirroring KANBasis.__init__/reset_parameters."""
    # weights: kaiming_uniform_(a=sqrt(5)/in_features), fan_in = in_features
    a = math.sqrt(5.0) / in_features
    gain = math.sqrt(2.0 / (1.0 + a * a))
    bound_w = gain * math.sqrt(3.0 / in_features)
    weights = jax.random.uniform(
        key, (num_basis, in_features), dtype=dtype, minval=-bound_w, maxval=bound_w)

    # bias: linspace(-bound, bound, num_basis) broadcast over in_features
    bound_b = (1.0 / math.sqrt(in_features)) / in_features
    bias_col = jnp.linspace(-bound_b, bound_b, num_basis, dtype=dtype)
    bias = jnp.tile(bias_col[:, None], (1, in_features))

    # beta = (2/k * 1/distance)^2, distance = 2/num_basis, k = max(log2(num_basis), 1)
    distance = 2.0 / num_basis
    k = max(math.log2(num_basis), 1.0)
    beta = (2.0 / k / distance) ** 2
    return weights, bias, beta


def kan_basis_ref(x, weights, bias, beta):
    z = x[..., None, :] * weights + bias
    return jnp.exp(-beta * z * z)


# TODO(synk): custom `kernel=` callables from the PyTorch module are not supported;
# only the default exp(-beta * x**2) basis is implemented.

if __name__ == "__main__":
    in_features = 16
    num_basis = 8
    batch_shape = (2, 8)   # arbitrary leading batch dims, as in '...i'

    key = jax.random.PRNGKey(0)
    k_param, k_x = jax.random.split(key)

    weights, bias, beta = init_kan_basis_params(k_param, in_features, num_basis)
    x = jax.random.normal(k_x, (*batch_shape, in_features), dtype=jnp.float32)

    y = kan_basis_forward(x, weights, bias, beta)
    y = jax.block_until_ready(y)

    y_ref = kan_basis_ref(x, weights, bias, beta)
    assert y.shape == (*batch_shape, num_basis, in_features), y.shape
    assert jnp.allclose(y, y_ref, atol=1e-5, rtol=1e-5), float(jnp.max(jnp.abs(y - y_ref)))

    print("KERNEL_OK")
</pallas_src>

<mosaic_0001>
module attributes {stable_mosaic.version = 11 : i64} {
  func.func @_kan_basis_kernel(%arg0: i32, %arg1: memref<16x16xf32, #tpu.memory_space<vmem>>, %arg2: memref<1x128xf32, #tpu.memory_space<vmem>>, %arg3: memref<1x128xf32, #tpu.memory_space<vmem>>, %arg4: memref<16x128xf32, #tpu.memory_space<vmem>>) attributes {dimension_semantics = [#tpu.dimension_semantics<parallel>], iteration_bounds = array<i64: 1>, scalar_prefetch = 0 : i64, scratch_operands = 0 : i64, tpu.core_type = #tpu.core_type<tc>, window_params = [{transform_indices = @transform_0, window_bounds = array<i64: 16, 16>}, {pipeline_mode = #tpu.pipeline_mode<synchronous>, transform_indices = @transform_1, window_bounds = array<i64: 1, 128>}, {pipeline_mode = #tpu.pipeline_mode<synchronous>, transform_indices = @transform_2, window_bounds = array<i64: 1, 128>}, {transform_indices = @transform_3, window_bounds = array<i64: 16, 128>}]} {
    %c0 = arith.constant 0 : index
    %c0_0 = arith.constant 0 : index
    %0 = vector.load %arg1[%c0, %c0_0] : memref<16x16xf32, #tpu.memory_space<vmem>>, vector<16x16xf32>
    %1 = tpu.concatenate %0, %0, %0, %0, %0, %0, %0, %0 in 1 : vector<16x16xf32>, vector<16x16xf32>, vector<16x16xf32>, vector<16x16xf32>, vector<16x16xf32>, vector<16x16xf32>, vector<16x16xf32>, vector<16x16xf32> -> vector<16x128xf32>
    %c0_1 = arith.constant 0 : index
    %c0_2 = arith.constant 0 : index
    %2 = vector.load %arg2[%c0_1, %c0_2] : memref<1x128xf32, #tpu.memory_space<vmem>>, vector<1x128xf32>
    %3 = vector.broadcast %2 : vector<1x128xf32> to vector<16x128xf32>
    %4 = arith.mulf %1, %3 : vector<16x128xf32>
    %c0_3 = arith.constant 0 : index
    %c0_4 = arith.constant 0 : index
    %5 = vector.load %arg3[%c0_3, %c0_4] : memref<1x128xf32, #tpu.memory_space<vmem>>, vector<1x128xf32>
    %6 = vector.broadcast %5 : vector<1x128xf32> to vector<16x128xf32>
    %7 = arith.addf %4, %6 : vector<16x128xf32>
    %8 = arith.mulf %7, %7 : vector<16x128xf32>
    %cst = arith.constant 0.000000e+00 : f32
    %9 = vector.broadcast %cst : f32 to vector<16x128xf32>
    %10 = arith.subf %9, %8 : vector<16x128xf32>
    %11 = math.exp %10 : vector<16x128xf32>
    %c0_5 = arith.constant 0 : index
    %c0_6 = arith.constant 0 : index
    %12 = vector.load %arg4[%c0_5, %c0_6] : memref<16x128xf32, #tpu.memory_space<vmem>>, vector<16x128xf32>
    tpu.vector_store %arg4[%c0_5, %c0_6], %11 {strides = array<i32>} : memref<16x128xf32, #tpu.memory_space<vmem>>, vector<16x128xf32>,
    return
  }
  func.func @transform_0(%arg0: i32) -> (i32, i32) {
    %c0_i32 = arith.constant 0 : i32
    %c0_i32_0 = arith.constant 0 : i32
    return %arg0, %c0_i32 : i32, i32
  }
  func.func @transform_1(%arg0: i32) -> (i32, i32) {
    %c0_i32 = arith.constant 0 : i32
    %c0_i32_0 = arith.constant 0 : i32
    %c0_i32_1 = arith.constant 0 : i32
    return %c0_i32, %c0_i32_0 : i32, i32
  }
  func.func @transform_2(%arg0: i32) -> (i32, i32) {
    %c0_i32 = arith.constant 0 : i32
    %c0_i32_0 = arith.constant 0 : i32
    %c0_i32_1 = arith.constant 0 : i32
    return %c0_i32, %c0_i32_0 : i32, i32
  }
  func.func @transform_3(%arg0: i32) -> (i32, i32) {
    %c0_i32 = arith.constant 0 : i32
    %c0_i32_0 = arith.constant 0 : i32
    return %arg0, %c0_i32 : i32, i32
  }
}

</mosaic_0001>

<llo_original>
// kernel: tpu_custom_call.1
$region0: #{tpu_custom_call.1}
  #allocation0 [shape = 'u32[]', space=smem, size = 0x4, offset = 0x4, fixed_abs, tag = 'smem constant byte address 0x4 - core index']
  #allocation1 [shape = 'u32[72,128]{1,0:T(1,128)}', space=vmem, size = 0x9000, scoped, tag = 'internal scratch']
  %s0 = inlined_call_operand.hbm [shape: f32[16,16], index: 0, kind: input, shape index: {}]
  %s1 = inlined_call_operand.hbm [shape: f32[1,128], index: 1, kind: input, shape index: {}]
  %s2 = inlined_call_operand.vmem [shape: f32[1,128], index: 2, kind: input, shape index: {}]
  %s3 = inlined_call_operand.hbm [shape: f32[16,128], index: 3, kind: output, shape index: {}]
  %s4 = sld [smem:[#allocation0]]
  $region30: #{tpu_custom_call.1} parent=0
    _
  %s6 = ssub.s32 1, %s4
  %s7 = scalar_select 0, %s6, %s4
  $region1: #{tpu_custom_call.1} parent=0
    #allocation2 [shape = 'u8[8192]{0}', space=vmem, size = 0x2000, scoped, tag = 'input window, operand 0, single buffered']
    #allocation3 [shape = 's32[1]{0}', space=sflag, size = 0x4, scoped, tag = 'scoped memory for tpu_custom_call.1']
    #allocation4 [shape = 's32[1]{0}', space=sflag, size = 0x4, scoped, tag = 'scoped memory for tpu_custom_call.1']
    #allocation5 [shape = 'u8[512]{0}', space=vmem, size = 0x400, scoped, tag = 'input window, operand 1, single buffered']
    #allocation6 [shape = 's32[1]{0}', space=sflag, size = 0x4, scoped, tag = 'scoped memory for tpu_custom_call.1']
    #allocation7 [shape = 'u8[8192]{0}', space=vmem, size = 0x2000, scoped, tag = 'output window, operand 0, single buffered']
    %8 = vsyncpa [#allocation3], 0
    %9 = vsyncpa [#allocation6], 0
    %10 = vsyncpa [#allocation4], 0
    // Predicated region
    $region2: #{tpu_custom_call.1} parent=1 // pred_check
      _
    $region3: #{tpu_custom_call.1} parent=1 // pred_check_branch
      %12 = sbr.rel (0) target = $region5
    $region4: #{tpu_custom_call.1} parent=1 // pred_region
      %14 = vsyncadd [#allocation3], 0
      %s15 = sshll.u32 %s0, 4
      %s16 = int_to_ptr.hbm [resolvable:$true] %s15
      %s17 = sshll.u32 [#allocation2], 4
      %s18 = int_to_ptr.vmem [resolvable:$true] %s17
      %23 = dma.hbm_to_vmem [thread:$0]  %s16, 256, %s18, [#allocation3], 128, 128, 8
    $region5: #{tpu_custom_call.1} parent=1 // pred_fallthru
      _
    // Predicated region
    $region6: #{tpu_custom_call.1} parent=1 // pred_check
      _
    $region7: #{tpu_custom_call.1} parent=1 // pred_check_branch
      %25 = sbr.rel (0) target = $region9
    $region8: #{tpu_custom_call.1} parent=1 // pred_region
      %27 = vsyncadd [#allocation6], 0
      %s29 = sshll.u32 %s1, 4
      %s30 = int_to_ptr.hbm [resolvable:$true] %s29
      %s31 = sshll.u32 [#allocation5], 4
      %s32 = int_to_ptr.vmem [resolvable:$true] %s31
      %34 = dma.hbm_to_vmem [thread:$0]  %s30, 16, %s32, [#allocation6]
    $region9: #{tpu_custom_call.1} parent=1 // pred_fallthru
      _
    // Predicated region
    $region10: #{tpu_custom_call.1} parent=1 // pred_check
      _
    $region11: #{tpu_custom_call.1} parent=1 // pred_check_branch
      %36 = sbr.rel (0) target = $region13
    $region12: #{tpu_custom_call.1} parent=1 // pred_region
      _
    $region13: #{tpu_custom_call.1} parent=1 // pred_fallthru
      _
    // Predicated region
    $region14: #{tpu_custom_call.1} parent=1 // pred_check
      _
    $region15: #{tpu_custom_call.1} parent=1 // pred_check_branch
      %38 = sbr.rel (0) target = $region17
    $region16: #{tpu_custom_call.1} parent=1 // pred_region
      %40 = dma.done [#allocation3], 256
    $region17: #{tpu_custom_call.1} parent=1 // pred_fallthru
      _
    // Predicated region
    $region18: #{tpu_custom_call.1} parent=1 // pred_check
      _
    $region19: #{tpu_custom_call.1} parent=1 // pred_check_branch
      %42 = sbr.rel (0) target = $region21
    $region20: #{tpu_custom_call.1} parent=1 // pred_region
      %44 = dma.done [#allocation6], 16
    $region21: #{tpu_custom_call.1} parent=1 // pred_fallthru
      _
    %v45 = vld [vmem:[#allocation2] sm:$0xff]
    %v46 = vld [vmem:[#allocation2 + $0x8] sm:$0xff]
    %49 = vrot.lane.b32.xlu0 %v45, 16
    %v50 = vpop.permute.xlu0 %49
    %51 = vrot.lane.b32.xlu0 %v46, 16
    %v52 = vpop.permute.xlu0 %51
    %55 = vrot.lane.b32.xlu0 %v45, 32
    %v56 = vpop.permute.xlu0 %55
    %57 = vrot.lane.b32.xlu0 %v46, 32
    %v58 = vpop.permute.xlu0 %57
    %61 = vrot.lane.b32.xlu0 %v45, 48
    %v62 = vpop.permute.xlu0 %61
    %63 = vrot.lane.b32.xlu0 %v46, 48
    %v64 = vpop.permute.xlu0 %63
    %67 = vrot.lane.b32.xlu0 %v45, 64
    %v68 = vpop.permute.xlu0 %67
    %69 = vrot.lane.b32.xlu0 %v46, 64
    %v70 = vpop.permute.xlu0 %69
    %73 = vrot.lane.b32.xlu0 %v45, 80
    %v74 = vpop.permute.xlu0 %73
    %75 = vrot.lane.b32.xlu0 %v46, 80
    %v76 = vpop.permute.xlu0 %75
    %79 = vrot.lane.b32.xlu0 %v45, 96
    %v80 = vpop.permute.xlu0 %79
    %81 = vrot.lane.b32.xlu0 %v46, 96
    %v82 = vpop.permute.xlu0 %81
    %85 = vrot.lane.b32.xlu0 %v45, 112
    %v86 = vpop.permute.xlu0 %85
    %87 = vrot.lane.b32.xlu0 %v46, 112
    %v88 = vpop.permute.xlu0 %87
    %vm91 = vcmask 130048
    %v92 = vsel %vm91, %v45, %v50
    %v93 = vsel %vm91, %v46, %v52
    %vm94 = vcmask 261120
    %v95 = vsel %vm94, %v92, %v56
    %v96 = vsel %vm94, %v93, %v58
    %vm97 = vcmask 392192
    %v98 = vsel %vm97, %v95, %v62
    %v99 = vsel %vm97, %v96, %v64
    %vm100 = vcmask 523264
    %v101 = vsel %vm100, %v98, %v68
    %v102 = vsel %vm100, %v99, %v70
    %vm103 = vcmask 654336
    %v104 = vsel %vm103, %v101, %v74
    %v105 = vsel %vm103, %v102, %v76
    %vm106 = vcmask 785408
    %v107 = vsel %vm106, %v104, %v80
    %v108 = vsel %vm106, %v105, %v82
    %vm109 = vcmask 916480
    %v110 = vsel %vm109, %v107, %v86
    %v111 = vsel %vm109, %v108, %v88
    %v112 = vld [vmem:[#allocation5] sm:$0x1]
    %v114 = vperm.slane %v112, 0
    %v116 = vmul.f32 %v110, %v114
    %v117 = vmul.f32 %v111, %v114
    %v118 = vld [vmem:[%s2] sm:$0x1]
    %v120 = vperm.slane %v118, 0
    %v122 = vadd.f32 %v116, %v120
    %v123 = vadd.f32 %v117, %v120
    %v124 = vmul.f32 %v122, %v122
    %v125 = vmul.f32 %v123, %v123
    %v126 = vsub.f32 0.0, %v124
    %v127 = vsub.f32 0.0, %v125
    %v128 = vmul.f32 %v126, 1.442695
    %v129 = vpow.pop %v128
    %v130 = vmul.f32 %v127, 1.442695
    %v131 = vpow.pop %v130
    %132 = vst [vmem:[#allocation7] sm:$0xff] %v129
    %133 = vst [vmem:[#allocation7 + $0x8] sm:$0xff] %v131
    // Predicated region
    $region22: #{tpu_custom_call.1} parent=1 // pred_check
      _
    $region23: #{tpu_custom_call.1} parent=1 // pred_check_branch
      %135 = sbr.rel (0) target = $region25
    $region24: #{tpu_custom_call.1} parent=1 // pred_region
      %137 = vsyncadd [#allocation4], 0
      %s138 = sshll.u32 [#allocation7], 4
      %s139 = int_to_ptr.vmem [resolvable:$true] %s138
      %s140 = sshll.u32 %s3, 4
      %s141 = int_to_ptr.hbm [resolvable:$true] %s140
      %146 = dma.vmem_to_hbm [thread:$0]  %s139, 256, %s141, [#allocation4], 128, 128, 8
    $region25: #{tpu_custom_call.1} parent=1 // pred_fallthru
      _
    // Predicated region
    $region26: #{tpu_custom_call.1} parent=1 // pred_check
      _
    $region27: #{tpu_custom_call.1} parent=1 // pred_check_branch
      %148 = sbr.rel (0) target = $region29
    $region28: #{tpu_custom_call.1} parent=1 // pred_region
      %150 = dma.done [#allocation4], 256
    $region29: #{tpu_custom_call.1} parent=1 // pred_fallthru
      _
    %151 = vsyncpa [#allocation3], 1
    %152 = vsyncpa [#allocation6], 1
    %153 = vsyncpa [#allocation4], 1

</llo_original>
